<compile_context>
chip_gen: v5e
topology: v5e:2x2
jax: 0.10.0
libtpu: 0.0.40
codegen_flags: <defaults>
</compile_context>

<pallas_src>
import functools

import jax
import jax.numpy as jnp
from jax.experimental import pallas as pl
from jax.experimental.pallas import tpu as pltpu


def _act(x, name):
    if name == "tanh":
        return jnp.tanh(x)
    elif name == "relu":
        return jnp.maximum(x, 0.0)
    raise Exception("Unknown activation function")


def _vmem():
    return pl.BlockSpec(memory_space=pltpu.MemorySpace.VMEM)


# ---------------------------------------------------------------------------
# Kernels
# ---------------------------------------------------------------------------
def _mlp_tail(h, w1_ref, b1_ref, w2_ref, b2_ref, w3_ref, b3_ref, out_ref,
              act_name):
    h1 = _act(jnp.dot(h, w1_ref[...], preferred_element_type=jnp.float32)
              + b1_ref[...], act_name)
    h2 = _act(jnp.dot(h1, w2_ref[...], preferred_element_type=jnp.float32)
              + b2_ref[...], act_name)
    logits = (jnp.dot(h2, w3_ref[...], preferred_element_type=jnp.float32)
              + b3_ref[...])
    # softmax(dim=-1)
    m = jnp.max(logits, axis=-1, keepdims=True)
    e = jnp.exp(logits - m)
    out_ref[...] = (e / jnp.sum(e, axis=-1, keepdims=True)).astype(out_ref.dtype)


def fused_conv_mlp_kernel(pt_ref, wc_ref, bc_ref, w1_ref, b1_ref, w2_ref,
                          b2_ref, w3_ref, b3_ref, out_ref, h_ref,
                          *, act_name, B, Pp, Cout):
    # Transposed conv matmul on the MXU:
    #   wc (Cout, KH*KW*Cin) @ patches_t (KH*KW*Cin, B*Pp) -> (Cout, B*Pp)
    a_t = jnp.dot(wc_ref[...], pt_ref[...], preferred_element_type=jnp.float32)
    a_t = _act(a_t + bc_ref[...], act_name)

    # Reorder (Cout, B*Pp) -> (B, Cout*Pp): exactly PyTorch's NCHW .view()
    # flatten (padded).  Every offset is a multiple of Pp (a multiple of 128),
    # so these are aligned full-vreg copies inside VMEM.  Padded lanes hold
    # act(bias) garbage but hit zero rows of the padded w1, contributing 0.
    for b in range(B):
        for c in range(Cout):
            h_ref[b:b + 1, c * Pp:(c + 1) * Pp] = \
                a_t[c:c + 1, b * Pp:(b + 1) * Pp]

    _mlp_tail(h_ref[...], w1_ref, b1_ref, w2_ref, b2_ref, w3_ref, b3_ref,
              out_ref, act_name)


def mlp_kernel(h_ref, w1_ref, b1_ref, w2_ref, b2_ref, w3_ref, b3_ref, out_ref,
               *, act_name):
    _mlp_tail(h_ref[...].astype(jnp.float32), w1_ref, b1_ref, w2_ref, b2_ref,
              w3_ref, b3_ref, out_ref, act_name)


# ---------------------------------------------------------------------------
# pallas_call wrappers
# ---------------------------------------------------------------------------
def _nbytes(*arrs):
    return int(sum(int(a.size) * int(a.dtype.itemsize) for a in arrs))


def fused_conv_mlp_call(patches_t, wmat_t, b0_col, w1, b1, w2, b2, w3, b3,
                        *, act_name, B, Pp, cout):
    kc = patches_t.shape[0]
    A = w3.shape[1]
    Fp = cout * Pp
    flops = 2 * (cout * kc * B * Pp + B * Fp * 64 + B * 64 * 32 + B * 32 * A)
    transc = B * Pp * cout + B * (64 + 32 + A)
    byts = _nbytes(patches_t, wmat_t, b0_col, w1, b1, w2, b2, w3, b3) + B * A * 4
    kern = functools.partial(fused_conv_mlp_kernel, act_name=act_name,
                             B=B, Pp=Pp, Cout=cout)
    return pl.pallas_call(
        kern,
        out_shape=jax.ShapeDtypeStruct((B, A), jnp.float32),
        in_specs=[_vmem()] * 9,
        out_specs=_vmem(),
        scratch_shapes=[pltpu.VMEM((B, Fp), jnp.float32)],
        cost_estimate=pl.CostEstimate(flops=int(flops),
                                      transcendentals=int(transc),
                                      bytes_accessed=int(byts)),
    )(patches_t, wmat_t, b0_col, w1, b1, w2, b2, w3, b3)


def mlp_call(h, w1, b1, w2, b2, w3, b3, act_name):
    B, F = h.shape
    A = w3.shape[1]
    flops = 2 * (B * F * 64 + B * 64 * 32 + B * 32 * A)
    transc = B * (64 + 32 + A)
    byts = _nbytes(h, w1, b1, w2, b2, w3, b3) + B * A * 4
    return pl.pallas_call(
        functools.partial(mlp_kernel, act_name=act_name),
        out_shape=jax.ShapeDtypeStruct((B, A), jnp.float32),
        in_specs=[_vmem()] * 7,
        out_specs=_vmem(),
        cost_estimate=pl.CostEstimate(flops=int(flops),
                                      transcendentals=int(transc),
                                      bytes_accessed=int(byts)),
    )(h, w1, b1, w2, b2, w3, b3)


# ---------------------------------------------------------------------------
# MLP_policy (JAX/Pallas version)
# ---------------------------------------------------------------------------
class MLPPolicyPallas:
    def __init__(self, matrix_size, num_channels, action_dim, is_conv,
                 activation_function, key):
        if activation_function not in ("tanh", "relu"):
            raise Exception("Unknown activation function")
        self.is_conv = is_conv
        self.act_name = activation_function
        self.cin = num_channels
        self.action_dim = action_dim
        keys = jax.random.split(key, 8)

        if is_conv:
            out, ks, s = 8, 3, 1
            self.cout, self.ks, self.stride = out, ks, s
            self.n = int((matrix_size - ks) / s + 1)
            self.P = self.n * self.n
            self.Pp = ((self.P + 127) // 128) * 128       # lane-aligned spatial
            # HWIO conv weight.
            self.w0 = 0.1 * jax.random.normal(keys[0], (ks, ks, num_channels, out),
                                              jnp.float32)
            self.b0 = 0.1 * jax.random.normal(keys[1], (1, out), jnp.float32)
            # Transposed forms used by the fused kernel.
            self.wmat_t = self.w0.reshape(ks * ks * num_channels, out).T  # (Cout, 9*Cin)
            self.b0_col = self.b0.T                                       # (Cout, 1)
            in_feat = out * self.P
        else:
            in_feat = num_channels * matrix_size * matrix_size

        self.w1 = 0.05 * jax.random.normal(keys[2], (in_feat, 64), jnp.float32)
        self.b1 = 0.05 * jax.random.normal(keys[3], (1, 64), jnp.float32)
        self.w2 = 0.05 * jax.random.normal(keys[4], (64, 32), jnp.float32)
        self.b2 = 0.05 * jax.random.normal(keys[5], (1, 32), jnp.float32)
        self.w3 = 0.05 * jax.random.normal(keys[6], (32, action_dim), jnp.float32)
        self.b3 = 0.05 * jax.random.normal(keys[7], (1, action_dim), jnp.float32)

        if is_conv:
            # Zero-pad w1 rows (Cout*P, 64) -> (Cout*Pp, 64) once at init so the
            # in-kernel NCHW flatten uses only lane-aligned copies; padded rows
            # are zero so the padded activation lanes contribute nothing.
            w1r = self.w1.reshape(self.cout, self.P, 64)
            self.w1_pad = jnp.pad(
                w1r, ((0, 0), (0, self.Pp - self.P), (0, 0))
            ).reshape(self.cout * self.Pp, 64)

    def forward(self, obs):
        if obs.ndim != 4:
            raise Exception("Input tensor should have dim = 4")
        B = obs.shape[0]
        if self.is_conv:
            # XLA glue (data movement only): NCHW -> NHWC, im2col, pad spatial
            # axis to Pp, and transpose so the kernel's conv output is already
            # (Cout, B*Pp).
            x = jnp.transpose(obs, (0, 2, 3, 1))
            slabs = [x[:, ki:ki + self.n, kj:kj + self.n, :]
                     for ki in range(self.ks) for kj in range(self.ks)]
            kc = self.ks * self.ks * self.cin
            patches = jnp.concatenate(slabs, axis=-1).reshape(B, self.P, kc)
            patches = jnp.pad(patches, ((0, 0), (0, self.Pp - self.P), (0, 0)))
            patches_t = patches.reshape(B * self.Pp, kc).T          # (kc, B*Pp)
            return fused_conv_mlp_call(
                patches_t, self.wmat_t, self.b0_col, self.w1_pad,
                self.b1, self.w2, self.b2, self.w3, self.b3,
                act_name=self.act_name, B=B, Pp=self.Pp, cout=self.cout)
        h = obs.reshape(B, -1)
        return mlp_call(h, self.w1, self.b1, self.w2, self.b2,
                        self.w3, self.b3, self.act_name)

    # Pure-JAX reference for correctness checking.
    def reference_forward(self, obs):
        x = obs
        if self.is_conv:
            w_oihw = jnp.transpose(self.w0, (3, 2, 0, 1))
            y = jax.lax.conv_general_dilated(
                x, w_oihw, window_strides=(1, 1), padding="VALID",
                dimension_numbers=("NCHW", "OIHW", "NCHW"),
                precision=jax.lax.Precision.HIGHEST)
            y = y + self.b0.reshape(1, -1, 1, 1)
            x = _act(y, self.act_name)
        x = x.reshape(x.shape[0], -1)
        hp = jax.lax.Precision.HIGHEST
        h1 = _act(jnp.dot(x, self.w1, precision=hp) + self.b1, self.act_name)
        h2 = _act(jnp.dot(h1, self.w2, precision=hp) + self.b2, self.act_name)
        logits = jnp.dot(h2, self.w3, precision=hp) + self.b3
        return jax.nn.softmax(logits, axis=-1)


if __name__ == "__main__":
    key = jax.random.PRNGKey(0)
    k_obs, k_p1, k_p2 = jax.random.split(key, 3)

    B, C, H = 2, 4, 16
    action_dim = 4
    obs = jax.random.normal(k_obs, (B, C, H, H), jnp.float32)

    # conv path (fused conv + MLP + softmax, single pallas_call)
    policy_conv = MLPPolicyPallas(matrix_size=H, num_channels=C,
                                  action_dim=action_dim, is_conv=True,
                                  activation_function="tanh", key=k_p1)
    out_conv = jax.block_until_ready(policy_conv.forward(obs))
    ref_conv = policy_conv.reference_forward(obs)
    assert out_conv.shape == (B, action_dim)
    assert jnp.allclose(out_conv, ref_conv, atol=2e-3, rtol=2e-3), (
        "conv-path mismatch")

    # non-conv path (single MLP pallas_call)
    policy_mlp = MLPPolicyPallas(matrix_size=H, num_channels=C,
                                 action_dim=action_dim, is_conv=False,
                                 activation_function="relu", key=k_p2)
    out_mlp = jax.block_until_ready(policy_mlp.forward(obs))
    ref_mlp = policy_mlp.reference_forward(obs)
    assert out_mlp.shape == (B, action_dim)
    assert jnp.allclose(out_mlp, ref_mlp, atol=2e-3, rtol=2e-3), (
        "mlp-path mismatch")

    print("KERNEL_OK")
</pallas_src>

<mosaic_0001>
module attributes {stable_mosaic.version = 11 : i64} {
  func.func @fused_conv_mlp_kernel(%arg0: memref<36x512xf32, #tpu.memory_space<vmem>>, %arg1: memref<8x36xf32, #tpu.memory_space<vmem>>, %arg2: memref<8x1xf32, #tpu.memory_space<vmem>>, %arg3: memref<2048x64xf32, #tpu.memory_space<vmem>>, %arg4: memref<1x64xf32, #tpu.memory_space<vmem>>, %arg5: memref<64x32xf32, #tpu.memory_space<vmem>>, %arg6: memref<1x32xf32, #tpu.memory_space<vmem>>, %arg7: memref<32x4xf32, #tpu.memory_space<vmem>>, %arg8: memref<1x4xf32, #tpu.memory_space<vmem>>, %arg9: memref<2x4xf32, #tpu.memory_space<vmem>>, %arg10: memref<2x2048xf32, #tpu.memory_space<vmem>>) attributes {dimension_semantics = [], scalar_prefetch = 0 : i64, scratch_operands = 1 : i64, tpu.core_type = #tpu.core_type<tc>} {
    %c0 = arith.constant 0 : index
    %c0_0 = arith.constant 0 : index
    %0 = vector.load %arg1[%c0, %c0_0] : memref<8x36xf32, #tpu.memory_space<vmem>>, vector<8x36xf32>
    %c0_1 = arith.constant 0 : index
    %c0_2 = arith.constant 0 : index
    %1 = vector.load %arg0[%c0_1, %c0_2] : memref<36x512xf32, #tpu.memory_space<vmem>>, vector<36x512xf32>
    %cst = arith.constant dense<0.000000e+00> : vector<8x512xf32>
    %2 = tpu.matmul %0, %1, %cst {dimension_numbers = #tpu.dot_dimension_numbers<[1], [0], [0], [1], [0, 0, 1, 1], [], []>} : vector<8x36xf32>, vector<36x512xf32>, vector<8x512xf32> -> vector<8x512xf32>
    %c0_3 = arith.constant 0 : index
    %c0_4 = arith.constant 0 : index
    %3 = vector.load %arg2[%c0_3, %c0_4] : memref<8x1xf32, #tpu.memory_space<vmem>>, vector<8x1xf32>
    %4 = vector.broadcast %3 : vector<8x1xf32> to vector<8x512xf32>
    %5 = arith.addf %2, %4 : vector<8x512xf32>
    %6 = math.tanh %5 : vector<8x512xf32>
    %7 = vector.extract_strided_slice %6 {offsets = [0, 0], sizes = [1, 256], strides = [1, 1]} : vector<8x512xf32> to vector<1x256xf32>
    %c0_5 = arith.constant 0 : index
    %c0_6 = arith.constant 0 : index
    %8 = vector.load %arg10[%c0_5, %c0_6] : memref<2x2048xf32, #tpu.memory_space<vmem>>, vector<1x256xf32>
    tpu.vector_store %arg10[%c0_5, %c0_6], %7 {strides = array<i32>} : memref<2x2048xf32, #tpu.memory_space<vmem>>, vector<1x256xf32>,
    %9 = vector.extract_strided_slice %6 {offsets = [1, 0], sizes = [1, 256], strides = [1, 1]} : vector<8x512xf32> to vector<1x256xf32>
    %c0_7 = arith.constant 0 : index
    %c256 = arith.constant 256 : index
    %10 = vector.load %arg10[%c0_7, %c256] : memref<2x2048xf32, #tpu.memory_space<vmem>>, vector<1x256xf32>
    tpu.vector_store %arg10[%c0_7, %c256], %9 {strides = array<i32>} : memref<2x2048xf32, #tpu.memory_space<vmem>>, vector<1x256xf32>,
    %11 = vector.extract_strided_slice %6 {offsets = [2, 0], sizes = [1, 256], strides = [1, 1]} : vector<8x512xf32> to vector<1x256xf32>
    %c0_8 = arith.constant 0 : index
    %c512 = arith.constant 512 : index
    %12 = vector.load %arg10[%c0_8, %c512] : memref<2x2048xf32, #tpu.memory_space<vmem>>, vector<1x256xf32>
    tpu.vector_store %arg10[%c0_8, %c512], %11 {strides = array<i32>} : memref<2x2048xf32, #tpu.memory_space<vmem>>, vector<1x256xf32>,
    %13 = vector.extract_strided_slice %6 {offsets = [3, 0], sizes = [1, 256], strides = [1, 1]} : vector<8x512xf32> to vector<1x256xf32>
    %c0_9 = arith.constant 0 : index
    %c768 = arith.constant 768 : index
    %14 = vector.load %arg10[%c0_9, %c768] : memref<2x2048xf32, #tpu.memory_space<vmem>>, vector<1x256xf32>
    tpu.vector_store %arg10[%c0_9, %c768], %13 {strides = array<i32>} : memref<2x2048xf32, #tpu.memory_space<vmem>>, vector<1x256xf32>,
    %15 = vector.extract_strided_slice %6 {offsets = [4, 0], sizes = [1, 256], strides = [1, 1]} : vector<8x512xf32> to vector<1x256xf32>
    %c0_10 = arith.constant 0 : index
    %c1024 = arith.constant 1024 : index
    %16 = vector.load %arg10[%c0_10, %c1024] : memref<2x2048xf32, #tpu.memory_space<vmem>>, vector<1x256xf32>
    tpu.vector_store %arg10[%c0_10, %c1024], %15 {strides = array<i32>} : memref<2x2048xf32, #tpu.memory_space<vmem>>, vector<1x256xf32>,
    %17 = vector.extract_strided_slice %6 {offsets = [5, 0], sizes = [1, 256], strides = [1, 1]} : vector<8x512xf32> to vector<1x256xf32>
    %c0_11 = arith.constant 0 : index
    %c1280 = arith.constant 1280 : index
    %18 = vector.load %arg10[%c0_11, %c1280] : memref<2x2048xf32, #tpu.memory_space<vmem>>, vector<1x256xf32>
    tpu.vector_store %arg10[%c0_11, %c1280], %17 {strides = array<i32>} : memref<2x2048xf32, #tpu.memory_space<vmem>>, vector<1x256xf32>,
    %19 = vector.extract_strided_slice %6 {offsets = [6, 0], sizes = [1, 256], strides = [1, 1]} : vector<8x512xf32> to vector<1x256xf32>
    %c0_12 = arith.constant 0 : index
    %c1536 = arith.constant 1536 : index
    %20 = vector.load %arg10[%c0_12, %c1536] : memref<2x2048xf32, #tpu.memory_space<vmem>>, vector<1x256xf32>
    tpu.vector_store %arg10[%c0_12, %c1536], %19 {strides = array<i32>} : memref<2x2048xf32, #tpu.memory_space<vmem>>, vector<1x256xf32>,
    %21 = vector.extract_strided_slice %6 {offsets = [7, 0], sizes = [1, 256], strides = [1, 1]} : vector<8x512xf32> to vector<1x256xf32>
    %c0_13 = arith.constant 0 : index
    %c1792 = arith.constant 1792 : index
    %22 = vector.load %arg10[%c0_13, %c1792] : memref<2x2048xf32, #tpu.memory_space<vmem>>, vector<1x256xf32>
    tpu.vector_store %arg10[%c0_13, %c1792], %21 {strides = array<i32>} : memref<2x2048xf32, #tpu.memory_space<vmem>>, vector<1x256xf32>,
    %23 = vector.extract_strided_slice %6 {offsets = [0, 256], sizes = [1, 256], strides = [1, 1]} : vector<8x512xf32> to vector<1x256xf32>
    %c1 = arith.constant 1 : index
    %c0_14 = arith.constant 0 : index
    %24 = vector.load %arg10[%c1, %c0_14] : memref<2x2048xf32, #tpu.memory_space<vmem>>, vector<1x256xf32>
    tpu.vector_store %arg10[%c1, %c0_14], %23 {strides = array<i32>} : memref<2x2048xf32, #tpu.memory_space<vmem>>, vector<1x256xf32>,
    %25 = vector.extract_strided_slice %6 {offsets = [1, 256], sizes = [1, 256], strides = [1, 1]} : vector<8x512xf32> to vector<1x256xf32>
    %c1_15 = arith.constant 1 : index
    %c256_16 = arith.constant 256 : index
    %26 = vector.load %arg10[%c1_15, %c256_16] : memref<2x2048xf32, #tpu.memory_space<vmem>>, vector<1x256xf32>
    tpu.vector_store %arg10[%c1_15, %c256_16], %25 {strides = array<i32>} : memref<2x2048xf32, #tpu.memory_space<vmem>>, vector<1x256xf32>,
    %27 = vector.extract_strided_slice %6 {offsets = [2, 256], sizes = [1, 256], strides = [1, 1]} : vector<8x512xf32> to vector<1x256xf32>
    %c1_17 = arith.constant 1 : index
    %c512_18 = arith.constant 512 : index
    %28 = vector.load %arg10[%c1_17, %c512_18] : memref<2x2048xf32, #tpu.memory_space<vmem>>, vector<1x256xf32>
    tpu.vector_store %arg10[%c1_17, %c512_18], %27 {strides = array<i32>} : memref<2x2048xf32, #tpu.memory_space<vmem>>, vector<1x256xf32>,
    %29 = vector.extract_strided_slice %6 {offsets = [3, 256], sizes = [1, 256], strides = [1, 1]} : vector<8x512xf32> to vector<1x256xf32>
    %c1_19 = arith.constant 1 : index
    %c768_20 = arith.constant 768 : index
    %30 = vector.load %arg10[%c1_19, %c768_20] : memref<2x2048xf32, #tpu.memory_space<vmem>>, vector<1x256xf32>
    tpu.vector_store %arg10[%c1_19, %c768_20], %29 {strides = array<i32>} : memref<2x2048xf32, #tpu.memory_space<vmem>>, vector<1x256xf32>,
    %31 = vector.extract_strided_slice %6 {offsets = [4, 256], sizes = [1, 256], strides = [1, 1]} : vector<8x512xf32> to vector<1x256xf32>
    %c1_21 = arith.constant 1 : index
    %c1024_22 = arith.constant 1024 : index
    %32 = vector.load %arg10[%c1_21, %c1024_22] : memref<2x2048xf32, #tpu.memory_space<vmem>>, vector<1x256xf32>
    tpu.vector_store %arg10[%c1_21, %c1024_22], %31 {strides = array<i32>} : memref<2x2048xf32, #tpu.memory_space<vmem>>, vector<1x256xf32>,
    %33 = vector.extract_strided_slice %6 {offsets = [5, 256], sizes = [1, 256], strides = [1, 1]} : vector<8x512xf32> to vector<1x256xf32>
    %c1_23 = arith.constant 1 : index
    %c1280_24 = arith.constant 1280 : index
    %34 = vector.load %arg10[%c1_23, %c1280_24] : memref<2x2048xf32, #tpu.memory_space<vmem>>, vector<1x256xf32>
    tpu.vector_store %arg10[%c1_23, %c1280_24], %33 {strides = array<i32>} : memref<2x2048xf32, #tpu.memory_space<vmem>>, vector<1x256xf32>,
    %35 = vector.extract_strided_slice %6 {offsets = [6, 256], sizes = [1, 256], strides = [1, 1]} : vector<8x512xf32> to vector<1x256xf32>
    %c1_25 = arith.constant 1 : index
    %c1536_26 = arith.constant 1536 : index
    %36 = vector.load %arg10[%c1_25, %c1536_26] : memref<2x2048xf32, #tpu.memory_space<vmem>>, vector<1x256xf32>
    tpu.vector_store %arg10[%c1_25, %c1536_26], %35 {strides = array<i32>} : memref<2x2048xf32, #tpu.memory_space<vmem>>, vector<1x256xf32>,
    %37 = vector.extract_strided_slice %6 {offsets = [7, 256], sizes = [1, 256], strides = [1, 1]} : vector<8x512xf32> to vector<1x256xf32>
    %c1_27 = arith.constant 1 : index
    %c1792_28 = arith.constant 1792 : index
    %38 = vector.load %arg10[%c1_27, %c1792_28] : memref<2x2048xf32, #tpu.memory_space<vmem>>, vector<1x256xf32>
    tpu.vector_store %arg10[%c1_27, %c1792_28], %37 {strides = array<i32>} : memref<2x2048xf32, #tpu.memory_space<vmem>>, vector<1x256xf32>,
    %c0_29 = arith.constant 0 : index
    %c0_30 = arith.constant 0 : index
    %39 = vector.load %arg10[%c0_29, %c0_30] : memref<2x2048xf32, #tpu.memory_space<vmem>>, vector<2x2048xf32>
    %c0_31 = arith.constant 0 : index
    %c0_32 = arith.constant 0 : index
    %40 = vector.load %arg3[%c0_31, %c0_32] : memref<2048x64xf32, #tpu.memory_space<vmem>>, vector<2048x64xf32>
    %cst_33 = arith.constant dense<0.000000e+00> : vector<2x64xf32>
    %41 = tpu.matmul %39, %40, %cst_33 {dimension_numbers = #tpu.dot_dimension_numbers<[1], [0], [0], [1], [0, 0, 1, 1], [], []>} : vector<2x2048xf32>, vector<2048x64xf32>, vector<2x64xf32> -> vector<2x64xf32>
    %c0_34 = arith.constant 0 : index
    %c0_35 = arith.constant 0 : index
    %42 = vector.load %arg4[%c0_34, %c0_35] : memref<1x64xf32, #tpu.memory_space<vmem>>, vector<1x64xf32>
    %43 = vector.broadcast %42 : vector<1x64xf32> to vector<2x64xf32>
    %44 = arith.addf %41, %43 : vector<2x64xf32>
    %45 = math.tanh %44 : vector<2x64xf32>
    %c0_36 = arith.constant 0 : index
    %c0_37 = arith.constant 0 : index
    %46 = vector.load %arg5[%c0_36, %c0_37] : memref<64x32xf32, #tpu.memory_space<vmem>>, vector<64x32xf32>
    %cst_38 = arith.constant dense<0.000000e+00> : vector<2x32xf32>
    %47 = tpu.matmul %45, %46, %cst_38 {dimension_numbers = #tpu.dot_dimension_numbers<[1], [0], [0], [1], [0, 0, 1, 1], [], []>} : vector<2x64xf32>, vector<64x32xf32>, vector<2x32xf32> -> vector<2x32xf32>
    %c0_39 = arith.constant 0 : index
    %c0_40 = arith.constant 0 : index
    %48 = vector.load %arg6[%c0_39, %c0_40] : memref<1x32xf32, #tpu.memory_space<vmem>>, vector<1x32xf32>
    %49 = vector.broadcast %48 : vector<1x32xf32> to vector<2x32xf32>
    %50 = arith.addf %47, %49 : vector<2x32xf32>
    %51 = math.tanh %50 : vector<2x32xf32>
    %c0_41 = arith.constant 0 : index
    %c0_42 = arith.constant 0 : index
    %52 = vector.load %arg7[%c0_41, %c0_42] : memref<32x4xf32, #tpu.memory_space<vmem>>, vector<32x4xf32>
    %cst_43 = arith.constant dense<0.000000e+00> : vector<2x4xf32>
    %53 = tpu.matmul %51, %52, %cst_43 {dimension_numbers = #tpu.dot_dimension_numbers<[1], [0], [0], [1], [0, 0, 1, 1], [], []>} : vector<2x32xf32>, vector<32x4xf32>, vector<2x4xf32> -> vector<2x4xf32>
    %c0_44 = arith.constant 0 : index
    %c0_45 = arith.constant 0 : index
    %54 = vector.load %arg8[%c0_44, %c0_45] : memref<1x4xf32, #tpu.memory_space<vmem>>, vector<1x4xf32>
    %55 = vector.broadcast %54 : vector<1x4xf32> to vector<2x4xf32>
    %56 = arith.addf %53, %55 : vector<2x4xf32>
    %cst_46 = arith.constant dense<0xFF800000> : vector<2xf32>
    %57 = vector.multi_reduction <maximumf>, %56, %cst_46 [1] : vector<2x4xf32> to vector<2xf32>
    %58 = vector.shape_cast %57 : vector<2xf32> to vector<2x1xf32>
    %59 = vector.broadcast %58 : vector<2x1xf32> to vector<2x4xf32>
    %60 = arith.subf %56, %59 : vector<2x4xf32>
    %61 = math.exp %60 : vector<2x4xf32>
    %cst_47 = arith.constant dense<0.000000e+00> : vector<2xf32>
    %62 = vector.multi_reduction <add>, %61, %cst_47 [1] : vector<2x4xf32> to vector<2xf32>
    %63 = vector.shape_cast %62 : vector<2xf32> to vector<2x1xf32>
    %64 = vector.broadcast %63 : vector<2x1xf32> to vector<2x4xf32>
    %65 = arith.divf %61, %64 : vector<2x4xf32>
    %c0_48 = arith.constant 0 : index
    %c0_49 = arith.constant 0 : index
    %66 = vector.load %arg9[%c0_48, %c0_49] : memref<2x4xf32, #tpu.memory_space<vmem>>, vector<2x4xf32>
    tpu.vector_store %arg9[%c0_48, %c0_49], %65 {strides = array<i32>} : memref<2x4xf32, #tpu.memory_space<vmem>>, vector<2x4xf32>,
    return
  }
}

</mosaic_0001>

<llo_original>
// kernel: tpu_custom_call.1
$region0: #{tpu_custom_call.1}
  #allocation0 [shape = 'u32[]', space=smem, size = 0x4, offset = 0x4, fixed_abs, tag = 'smem constant byte address 0x4 - core index']
  #allocation1 [shape = 'u32[72,128]{1,0:T(1,128)}', space=vmem, size = 0x9000, scoped, tag = 'internal scratch']
  #allocation2 [shape = 'f32[2,2048]{1,0:T(2,128)}', space=vmem, size = 0x4000, scoped, tag = 'scratch operand']
  %s0 = inlined_call_operand.vmem [shape: f32[36,512], index: 0, kind: input, shape index: {}]
  %s1 = inlined_call_operand.vmem [shape: f32[8,36], index: 1, kind: input, shape index: {}]
  %s2 = inlined_call_operand.vmem [shape: f32[8,1], index: 2, kind: input, shape index: {}]
  %s3 = inlined_call_operand.vmem [shape: f32[2048,64], index: 3, kind: input, shape index: {}]
  %s4 = inlined_call_operand.vmem [shape: f32[1,64], index: 4, kind: input, shape index: {}]
  %s5 = inlined_call_operand.vmem [shape: f32[64,32], index: 5, kind: input, shape index: {}]
  %s6 = inlined_call_operand.vmem [shape: f32[1,32], index: 6, kind: input, shape index: {}]
  %s7 = inlined_call_operand.vmem [shape: f32[32,4], index: 7, kind: input, shape index: {}]
  %s8 = inlined_call_operand.vmem [shape: f32[1,4], index: 8, kind: input, shape index: {}]
  %s9 = inlined_call_operand.hbm [shape: f32[2,4], index: 9, kind: output, shape index: {}]
  %s10 = sld [smem:[#allocation0]]
  $region46: #{tpu_custom_call.1} parent=0
    _
  %s12 = ssub.s32 1, %s10
  %s13 = scalar_select 0, %s12, %s10
  $region1: #{tpu_custom_call.1} parent=0
    #allocation3 [shape = 'u8[1024]{0}', space=vmem, size = 0x400, scoped, tag = 'output window, operand 0, single buffered']
    #allocation4 [shape = 's32[1]{0}', space=sflag, size = 0x4, scoped, tag = 'scoped memory for tpu_custom_call.1']
    %14 = vsyncpa [#allocation4], 0
    // Predicated region
    $region2: #{tpu_custom_call.1} parent=1 // pred_check
      _
    $region3: #{tpu_custom_call.1} parent=1 // pred_check_branch
      %16 = sbr.rel (0) target = $region5
    $region4: #{tpu_custom_call.1} parent=1 // pred_region
      _
    $region5: #{tpu_custom_call.1} parent=1 // pred_fallthru
      _
    // Predicated region
    $region6: #{tpu_custom_call.1} parent=1 // pred_check
      _
    $region7: #{tpu_custom_call.1} parent=1 // pred_check_branch
      %18 = sbr.rel (0) target = $region9
    $region8: #{tpu_custom_call.1} parent=1 // pred_region
      _
    $region9: #{tpu_custom_call.1} parent=1 // pred_fallthru
      _
    // Predicated region
    $region10: #{tpu_custom_call.1} parent=1 // pred_check
      _
    $region11: #{tpu_custom_call.1} parent=1 // pred_check_branch
      %20 = sbr.rel (0) target = $region13
    $region12: #{tpu_custom_call.1} parent=1 // pred_region
      _
    $region13: #{tpu_custom_call.1} parent=1 // pred_fallthru
      _
    // Predicated region
    $region14: #{tpu_custom_call.1} parent=1 // pred_check
      _
    $region15: #{tpu_custom_call.1} parent=1 // pred_check_branch
      %22 = sbr.rel (0) target = $region17
    $region16: #{tpu_custom_call.1} parent=1 // pred_region
      _
    $region17: #{tpu_custom_call.1} parent=1 // pred_fallthru
      _
    // Predicated region
    $region18: #{tpu_custom_call.1} parent=1 // pred_check
      _
    $region19: #{tpu_custom_call.1} parent=1 // pred_check_branch
      %24 = sbr.rel (0) target = $region21
    $region20: #{tpu_custom_call.1} parent=1 // pred_region
      _
    $region21: #{tpu_custom_call.1} parent=1 // pred_fallthru
      _
    // Predicated region
    $region22: #{tpu_custom_call.1} parent=1 // pred_check
      _
    $region23: #{tpu_custom_call.1} parent=1 // pred_check_branch
      %26 = sbr.rel (0) target = $region25
    $region24: #{tpu_custom_call.1} parent=1 // pred_region
      _
    $region25: #{tpu_custom_call.1} parent=1 // pred_fallthru
      _
    // Predicated region
    $region26: #{tpu_custom_call.1} parent=1 // pred_check
      _
    $region27: #{tpu_custom_call.1} parent=1 // pred_check_branch
      %28 = sbr.rel (0) target = $region29
    $region28: #{tpu_custom_call.1} parent=1 // pred_region
      _
    $region29: #{tpu_custom_call.1} parent=1 // pred_fallthru
      _
    // Predicated region
    $region30: #{tpu_custom_call.1} parent=1 // pred_check
      _
    $region31: #{tpu_custom_call.1} parent=1 // pred_check_branch
      %30 = sbr.rel (0) target = $region33
    $region32: #{tpu_custom_call.1} parent=1 // pred_region
      _
    $region33: #{tpu_custom_call.1} parent=1 // pred_fallthru
      _
    // Predicated region
    $region34: #{tpu_custom_call.1} parent=1 // pred_check
      _
    $region35: #{tpu_custom_call.1} parent=1 // pred_check_branch
      %32 = sbr.rel (0) target = $region37
    $region36: #{tpu_custom_call.1} parent=1 // pred_region
      _
    $region37: #{tpu_custom_call.1} parent=1 // pred_fallthru
      _
    %v33 = vld [vmem:[%s1] sm:$0xff]
    %v34 = vld [vmem:[%s0] sm:$0xff]
    %v35 = vld [vmem:[%s0 + $0x8] sm:$0xff]
    %v36 = vld [vmem:[%s0 + $0x10] sm:$0xff]
    %v37 = vld [vmem:[%s0 + $0x18] sm:$0xff]
    %v38 = vld [vmem:[%s0 + $0x20] sm:$0xff]
    %v39 = vld [vmem:[%s0 + $0x28] sm:$0xff]
    %v40 = vld [vmem:[%s0 + $0x30] sm:$0xff]
    %v41 = vld [vmem:[%s0 + $0x38] sm:$0xff]
    %v42 = vld [vmem:[%s0 + $0x40] sm:$0xff]
    %v43 = vld [vmem:[%s0 + $0x48] sm:$0xff]
    %v44 = vld [vmem:[%s0 + $0x50] sm:$0xff]
    %v45 = vld [vmem:[%s0 + $0x58] sm:$0xff]
    %v46 = vld [vmem:[%s0 + $0x60] sm:$0xff]
    %v47 = vld [vmem:[%s0 + $0x68] sm:$0xff]
    %v48 = vld [vmem:[%s0 + $0x70] sm:$0xff]
    %v49 = vld [vmem:[%s0 + $0x78] sm:$0xff]
    %v50 = vld [vmem:[%s0 + $0x80] sm:$0xf]
    %v51 = vld [vmem:[%s0 + $0x88] sm:$0xf]
    %v52 = vld [vmem:[%s0 + $0x90] sm:$0xf]
    %v53 = vld [vmem:[%s0 + $0x98] sm:$0xf]
    %v54 = vld [vmem:[%s2] sm:$0xff]
    %56 = vset.pattern.permute.xlu0 0
    %57 = vperm.xlu0 %56, %v54
    %v58 = vpop.permute.xlu0 %57
    %vm60 = vcmask 293888
    %v62 = vsel %vm60, %v33, 0
    %vm64 = vcmask 1043456
    %v66 = vsel %vm64, %v50, 0
    %v69 = vsel %vm64, %v51, 0
    %v72 = vsel %vm64, %v52, 0
    %v75 = vsel %vm64, %v53, 0
    %77 = vmatpush.msra.mxu0 0.0
    %78 = vmatpush.msra.mxu0 0.0
    %79 = vmatpush.msra.mxu0 0.0
    %80 = vmatpush.msra.mxu0 0.0
    %81 = vmatpush.msra.mxu0 0.0
    %82 = vmatpush.msra.mxu0 0.0
    %83 = vmatpush.msra.mxu0 0.0
    %84 = vmatpush.msra.mxu0 0.0
    %85 = vmatpush.msra.mxu0 0.0
    %86 = vmatpush.msra.mxu0 0.0
    %87 = vmatpush.msra.mxu0 0.0
    %88 = vmatpush.msra.mxu0 %v66
    %89 = vmatpush.msra.mxu0 %v46
    %90 = vmatpush.msra.mxu0 %v42
    %91 = vmatpush.msra.mxu0 %v38
    %92 = vmatpush.msra.mxu0 %v34
    %93 = vmatmul.f32.gmra.mxu0 %v62
    %v94 = vpop.f32.mrf.mxu0
    %v95 = vadd.f32 %v58, %v94
    %96 = vdwg.mxu0
    %97 = vmatpush.msra.mxu0 0.0
    %98 = vmatpush.msra.mxu0 0.0
    %99 = vmatpush.msra.mxu0 0.0
    %100 = vmatpush.msra.mxu0 0.0
    %101 = vmatpush.msra.mxu0 0.0
    %102 = vmatpush.msra.mxu0 0.0
    %103 = vmatpush.msra.mxu0 0.0
    %104 = vmatpush.msra.mxu0 0.0
    %105 = vmatpush.msra.mxu0 0.0
    %106 = vmatpush.msra.mxu0 0.0
    %107 = vmatpush.msra.mxu0 0.0
    %108 = vmatpush.msra.mxu0 %v69
    %109 = vmatpush.msra.mxu0 %v47
    %110 = vmatpush.msra.mxu0 %v43
    %111 = vmatpush.msra.mxu0 %v39
    %112 = vmatpush.msra.mxu0 %v35
    %113 = vmatmul.f32.gmra.mxu0 %v62
    %v114 = vpop.f32.mrf.mxu0
    %v115 = vadd.f32 %v58, %v114
    %116 = vdwg.mxu0
    %117 = vmatpush.msra.mxu0 0.0
    %118 = vmatpush.msra.mxu0 0.0
    %119 = vmatpush.msra.mxu0 0.0
    %120 = vmatpush.msra.mxu0 0.0
    %121 = vmatpush.msra.mxu0 0.0
    %122 = vmatpush.msra.mxu0 0.0
    %123 = vmatpush.msra.mxu0 0.0
    %124 = vmatpush.msra.mxu0 0.0
    %125 = vmatpush.msra.mxu0 0.0
    %126 = vmatpush.msra.mxu0 0.0
    %127 = vmatpush.msra.mxu0 0.0
    %128 = vmatpush.msra.mxu0 %v72
    %129 = vmatpush.msra.mxu0 %v48
    %130 = vmatpush.msra.mxu0 %v44
    %131 = vmatpush.msra.mxu0 %v40
    %132 = vmatpush.msra.mxu0 %v36
    %133 = vmatmul.f32.gmra.mxu0 %v62
    %v134 = vpop.f32.mrf.mxu0
    %v135 = vadd.f32 %v58, %v134
    %136 = vdwg.mxu0
    %137 = vmatpush.msra.mxu0 0.0
    %138 = vmatpush.msra.mxu0 0.0
    %139 = vmatpush.msra.mxu0 0.0
    %140 = vmatpush.msra.mxu0 0.0
    %141 = vmatpush.msra.mxu0 0.0
    %142 = vmatpush.msra.mxu0 0.0
    %143 = vmatpush.msra.mxu0 0.0
    %144 = vmatpush.msra.mxu0 0.0
    %145 = vmatpush.msra.mxu0 0.0
    %146 = vmatpush.msra.mxu0 0.0
    %147 = vmatpush.msra.mxu0 0.0
    %148 = vmatpush.msra.mxu0 %v75
    %149 = vmatpush.msra.mxu0 %v49
    %150 = vmatpush.msra.mxu0 %v45
    %151 = vmatpush.msra.mxu0 %v41
    %152 = vmatpush.msra.mxu0 %v37
    %153 = vmatmul.f32.gmra.mxu0 %v62
    %v154 = vpop.f32.mrf.mxu0
    %v155 = vadd.f32 %v58, %v154
    %156 = vdwg.mxu0
    %v157 = vtanh.pop %v95
    %v158 = vtanh.pop %v115
    %v159 = vtanh.pop %v135
    %v160 = vtanh.pop %v155
    %v163 = vrot.slane %v158, 7
    %vm164 = vcmask 1040384
    %v165 = vsel %vm164, %v157, %v163
    %v167 = vlaneseq
    %vm168 = vcmp.ge.s32.totalorder %v167, 0
    %vm169 = vcmp.lt.s32.totalorder %v167, 256
    %vm170 = vmand %vm168, %vm169
    %171 = vst.msk [vmem:[#allocation2] ss:$2 sm:$0x3] %vm170, %v165
    %172 = vst [vmem:[#allocation1] sm:$0xff] %v157
    %173 = vst [vmem:[#allocation1 + $0x9] sm:$0xff] %v158
    %s174 = scalar_lea.vmem [#allocation1], 1
    %v175 = vld [vmem:[%s174] ss:$9 sm:$0xff]
    %s177 = scalar_lea.vmem [#allocation2], 4
    %178 = vst.msk [vmem:[%s177] ss:$2 sm:$0x3] %vm170, %v175
    %179 = vst [vmem:[#allocation1] sm:$0xff] %v157
    %180 = vst [vmem:[#allocation1 + $0x9] sm:$0xff] %v158
    %s181 = scalar_lea.vmem [#allocation1], 2
    %v182 = vld [vmem:[%s181] ss:$9 sm:$0xff]
    %s184 = scalar_lea.vmem [#allocation2], 8
    %185 = vst.msk [vmem:[%s184] ss:$2 sm:$0x3] %vm170, %v182
    %186 = vst [vmem:[#allocation1] sm:$0xff] %v157
    %187 = vst [vmem:[#allocation1 + $0x9] sm:$0xff] %v158
    %s188 = scalar_lea.vmem [#allocation1], 3
    %v189 = vld [vmem:[%s188] ss:$9 sm:$0xff]
    %s191 = scalar_lea.vmem [#allocation2], 12
    %192 = vst.msk [vmem:[%s191] ss:$2 sm:$0x3] %vm170, %v189
    %193 = vst [vmem:[#allocation1] sm:$0xff] %v157
    %194 = vst [vmem:[#allocation1 + $0x9] sm:$0xff] %v158
    %s195 = scalar_lea.vmem [#allocation1], 4
    %v196 = vld [vmem:[%s195] ss:$9 sm:$0xff]
    %s198 = scalar_lea.vmem [#allocation2], 16
    %199 = vst.msk [vmem:[%s198] ss:$2 sm:$0x3] %vm170, %v196
    %200 = vst [vmem:[#allocation1] sm:$0xff] %v157
    %201 = vst [vmem:[#allocation1 + $0x9] sm:$0xff] %v158
    %s202 = scalar_lea.vmem [#allocation1], 5
    %v203 = vld [vmem:[%s202] ss:$9 sm:$0xff]
    %s205 = scalar_lea.vmem [#allocation2], 20
    %206 = vst.msk [vmem:[%s205] ss:$2 sm:$0x3] %vm170, %v203
    %207 = vst [vmem:[#allocation1] sm:$0xff] %v157
    %208 = vst [vmem:[#allocation1 + $0x9] sm:$0xff] %v158
    %s209 = scalar_lea.vmem [#allocation1], 6
    %v210 = vld [vmem:[%s209] ss:$9 sm:$0xff]
    %s212 = scalar_lea.vmem [#allocation2], 24
    %213 = vst.msk [vmem:[%s212] ss:$2 sm:$0x3] %vm170, %v210
    %214 = vst [vmem:[#allocation1] sm:$0xff] %v157
    %215 = vst [vmem:[#allocation1 + $0x9] sm:$0xff] %v158
    %s216 = scalar_lea.vmem [#allocation1], 7
    %v217 = vld [vmem:[%s216] ss:$9 sm:$0xff]
    %s219 = scalar_lea.vmem [#allocation2], 28
    %220 = vst.msk [vmem:[%s219] ss:$2 sm:$0x3] %vm170, %v217
    %v223 = vrot.slane %v160, 7
    %v224 = vsel %vm164, %v159, %v223
    %s226 = scalar_lea.vmem [#allocation2], 1
    %227 = vst.msk [vmem:[%s226] ss:$2 sm:$0x3] %vm170, %v224
    %228 = vst [vmem:[#allocation1] sm:$0xff] %v159
    %229 = vst [vmem:[#allocation1 + $0x9] sm:$0xff] %v160
    %s230 = scalar_lea.vmem [#allocation1], 1
    %v231 = vld [vmem:[%s230] ss:$9 sm:$0xff]
    %s233 = scalar_lea.vmem [#allocation2], 5
    %234 = vst.msk [vmem:[%s233] ss:$2 sm:$0x3] %vm170, %v231
    %235 = vst [vmem:[#allocation1] sm:$0xff] %v159
    %236 = vst [vmem:[#allocation1 + $0x9] sm:$0xff] %v160
    %s237 = scalar_lea.vmem [#allocation1], 2
    %v238 = vld [vmem:[%s237] ss:$9 sm:$0xff]
    %s240 = scalar_lea.vmem [#allocation2], 9
    %241 = vst.msk [vmem:[%s240] ss:$2 sm:$0x3] %vm170, %v238
    %242 = vst [vmem:[#allocation1] sm:$0xff] %v159
    %243 = vst [vmem:[#allocation1 + $0x9] sm:$0xff] %v160
    %s244 = scalar_lea.vmem [#allocation1], 3
    %v245 = vld [vmem:[%s244] ss:$9 sm:$0xff]
    %s247 = scalar_lea.vmem [#allocation2], 13
    %248 = vst.msk [vmem:[%s247] ss:$2 sm:$0x3] %vm170, %v245
    %249 = vst [vmem:[#allocation1] sm:$0xff] %v159
    %250 = vst [vmem:[#allocation1 + $0x9] sm:$0xff] %v160
    %s251 = scalar_lea.vmem [#allocation1], 4
    %v252 = vld [vmem:[%s251] ss:$9 sm:$0xff]
    %s254 = scalar_lea.vmem [#allocation2], 17
    %255 = vst.msk [vmem:[%s254] ss:$2 sm:$0x3] %vm170, %v252
    %256 = vst [vmem:[#allocation1] sm:$0xff] %v159
    %257 = vst [vmem:[#allocation1 + $0x9] sm:$0xff] %v160
    %s258 = scalar_lea.vmem [#allocation1], 5
    %v259 = vld [vmem:[%s258] ss:$9 sm:$0xff]
    %s261 = scalar_lea.vmem [#allocation2], 21
    %262 = vst.msk [vmem:[%s261] ss:$2 sm:$0x3] %vm170, %v259
    %263 = vst [vmem:[#allocation1] sm:$0xff] %v159
    %264 = vst [vmem:[#allocation1 + $0x9] sm:$0xff] %v160
    %s265 = scalar_lea.vmem [#allocation1], 6
    %v266 = vld [vmem:[%s265] ss:$9 sm:$0xff]
    %s268 = scalar_lea.vmem [#allocation2], 25
    %269 = vst.msk [vmem:[%s268] ss:$2 sm:$0x3] %vm170, %v266
    %270 = vst [vmem:[#allocation1] sm:$0xff] %v159
    %271 = vst [vmem:[#allocation1 + $0x9] sm:$0xff] %v160
    %s272 = scalar_lea.vmem [#allocation1], 7
    %v273 = vld [vmem:[%s272] ss:$9 sm:$0xff]
    %s275 = scalar_lea.vmem [#allocation2], 29
    %276 = vst.msk [vmem:[%s275] ss:$2 sm:$0x3] %vm170, %v273
    %v277 = vld [vmem:[#allocation2] sm:$0xff]
    %v278 = vld [vmem:[#allocation2 + $0x8] sm:$0xff]
    %v279 = vld [vmem:[#allocation2 + $0x10] sm:$0xff]
    %v280 = vld [vmem:[#allocation2 + $0x18] sm:$0xff]
    %v281 = vld [vmem:[%s3] sm:$0xff]
    %v282 = vld [vmem:[%s3 + $0x8] sm:$0xff]
    %v283 = vld [vmem:[%s3 + $0x10] sm:$0xff]
    %v284 = vld [vmem:[%s3 + $0x18] sm:$0xff]
    %v285 = vld [vmem:[%s3 + $0x20] sm:$0xff]
    %v286 = vld [vmem:[%s3 + $0x28] sm:$0xff]
    %v287 = vld [vmem:[%s3 + $0x30] sm:$0xff]
    %v288 = vld [vmem:[%s3 + $0x38] sm:$0xff]
    %v289 = vld [vmem:[%s3 + $0x40] sm:$0xff]
    %v290 = vld [vmem:[%s3 + $0x48] sm:$0xff]
    %v291 = vld [vmem:[%s3 + $0x50] sm:$0xff]
    %v292 = vld [vmem:[%s3 + $0x58] sm:$0xff]
    %v293 = vld [vmem:[%s3 + $0x60] sm:$0xff]
    %v294 = vld [vmem:[%s3 + $0x68] sm:$0xff]
    %v295 = vld [vmem:[%s3 + $0x70] sm:$0xff]
    %v296 = vld [vmem:[%s3 + $0x78] sm:$0xff]
    %v297 = vld [vmem:[%s3 + $0x80] sm:$0xff]
    %v298 = vld [vmem:[%s3 + $0x88] sm:$0xff]
    %v299 = vld [vmem:[%s3 + $0x90] sm:$0xff]
    %v300 = vld [vmem:[%s3 + $0x98] sm:$0xff]
    %v301 = vld [vmem:[%s3 + $0xa0] sm:$0xff]
    %v302 = vld [vmem:[%s3 + $0xa8] sm:$0xff]
    %v303 = vld [vmem:[%s3 + $0xb0] sm:$0xff]
    %v304 = vld [vmem:[%s3 + $0xb8] sm:$0xff]
    %v305 = vld [vmem:[%s3 + $0xc0] sm:$0xff]
    %v306 = vld [vmem:[%s3 + $0xc8] sm:$0xff]
    %v307 = vld [vmem:[%s3 + $0xd0] sm:$0xff]
    %v308 = vld [vmem:[%s3 + $0xd8] sm:$0xff]
    %v309 = vld [vmem:[%s3 + $0xe0] sm:$0xff]
    %v310 = vld [vmem:[%s3 + $0xe8] sm:$0xff]
    %v311 = vld [vmem:[%s3 + $0xf0] sm:$0xff]
    %v312 = vld [vmem:[%s3 + $0xf8] sm:$0xff]
    %v313 = vld [vmem:[%s3 + $0x100] sm:$0xff]
    %v314 = vld [vmem:[%s3 + $0x108] sm:$0xff]
    %v315 = vld [vmem:[%s3 + $0x110] sm:$0xff]
    %v316 = vld [vmem:[%s3 + $0x118] sm:$0xff]
    %v317 = vld [vmem:[%s3 + $0x120] sm:$0xff]
    %v318 = vld [vmem:[%s3 + $0x128] sm:$0xff]
    %v319 = vld [vmem:[%s3 + $0x130] sm:$0xff]
    %v320 = vld [vmem:[%s3 + $0x138] sm:$0xff]
    %v321 = vld [vmem:[%s3 + $0x140] sm:$0xff]
    %v322 = vld [vmem:[%s3 + $0x148] sm:$0xff]
    %v323 = vld [vmem:[%s3 + $0x150] sm:$0xff]
    %v324 = vld [vmem:[%s3 + $0x158] sm:$0xff]
    %v325 = vld [vmem:[%s3 + $0x160] sm:$0xff]
    %v326 = vld [vmem:[%s3 + $0x168] sm:$0xff]
    %v327 = vld [vmem:[%s3 + $0x170] sm:$0xff]
    %v328 = vld [vmem:[%s3 + $0x178] sm:$0xff]
    %v329 = vld [vmem:[%s3 + $0x180] sm:$0xff]
    %v330 = vld [vmem:[%s3 + $0x188] sm:$0xff]
    %v331 = vld [vmem:[%s3 + $0x190] sm:$0xff]
    %v332 = vld [vmem:[%s3 + $0x198] sm:$0xff]
    %v333 = vld [vmem:[%s3 + $0x1a0] sm:$0xff]
    %v334 = vld [vmem:[%s3 + $0x1a8] sm:$0xff]
    %v335 = vld [vmem:[%s3 + $0x1b0] sm:$0xff]
    %v336 = vld [vmem:[%s3 + $0x1b8] sm:$0xff]
    %v337 = vld [vmem:[%s3 + $0x1c0] sm:$0xff]
    %v338 = vld [vmem:[%s3 + $0x1c8] sm:$0xff]
    %v339 = vld [vmem:[%s3 + $0x1d0] sm:$0xff]
    %v340 = vld [vmem:[%s3 + $0x1d8] sm:$0xff]
    %v341 = vld [vmem:[%s3 + $0x1e0] sm:$0xff]
    %v342 = vld [vmem:[%s3 + $0x1e8] sm:$0xff]
    %v343 = vld [vmem:[%s3 + $0x1f0] sm:$0xff]
    %v344 = vld [vmem:[%s3 + $0x1f8] sm:$0xff]
    %v345 = vld [vmem:[%s3 + $0x200] sm:$0xff]
    %v346 = vld [vmem:[%s3 + $0x208] sm:$0xff]
    %v347 = vld [vmem:[%s3 + $0x210] sm:$0xff]
    %v348 = vld [vmem:[%s3 + $0x218] sm:$0xff]
    %v349 = vld [vmem:[%s3 + $0x220] sm:$0xff]
    %v350 = vld [vmem:[%s3 + $0x228] sm:$0xff]
    %v351 = vld [vmem:[%s3 + $0x230] sm:$0xff]
    %v352 = vld [vmem:[%s3 + $0x238] sm:$0xff]
    %v353 = vld [vmem:[%s3 + $0x240] sm:$0xff]
    %v354 = vld [vmem:[%s3 + $0x248] sm:$0xff]
    %v355 = vld [vmem:[%s3 + $0x250] sm:$0xff]
    %v356 = vld [vmem:[%s3 + $0x258] sm:$0xff]
    %v357 = vld [vmem:[%s3 + $0x260] sm:$0xff]
    %v358 = vld [vmem:[%s3 + $0x268] sm:$0xff]
    %v359 = vld [vmem:[%s3 + $0x270] sm:$0xff]
    %v360 = vld [vmem:[%s3 + $0x278] sm:$0xff]
    %v361 = vld [vmem:[%s3 + $0x280] sm:$0xff]
    %v362 = vld [vmem:[%s3 + $0x288] sm:$0xff]
    %v363 = vld [vmem:[%s3 + $0x290] sm:$0xff]
    %v364 = vld [vmem:[%s3 + $0x298] sm:$0xff]
    %v365 = vld [vmem:[%s3 + $0x2a0] sm:$0xff]
    %v366 = vld [vmem:[%s3 + $0x2a8] sm:$0xff]
    %v367 = vld [vmem:[%s3 + $0x2b0] sm:$0xff]
    %v368 = vld [vmem:[%s3 + $0x2b8] sm:$0xff]
    %v369 = vld [vmem:[%s3 + $0x2c0] sm:$0xff]
    %v370 = vld [vmem:[%s3 + $0x2c8] sm:$0xff]
    %v371 = vld [vmem:[%s3 + $0x2d0] sm:$0xff]
    %v372 = vld [vmem:[%s3 + $0x2d8] sm:$0xff]
    %v373 = vld [vmem:[%s3 + $0x2e0] sm:$0xff]
    %v374 = vld [vmem:[%s3 + $0x2e8] sm:$0xff]
    %v375 = vld [vmem:[%s3 + $0x2f0] sm:$0xff]
    %v376 = vld [vmem:[%s3 + $0x2f8] sm:$0xff]
    %v377 = vld [vmem:[%s3 + $0x300] sm:$0xff]
    %v378 = vld [vmem:[%s3 + $0x308] sm:$0xff]
    %v379 = vld [vmem:[%s3 + $0x310] sm:$0xff]
    %v380 = vld [vmem:[%s3 + $0x318] sm:$0xff]
    %v381 = vld [vmem:[%s3 + $0x320] sm:$0xff]
    %v382 = vld [vmem:[%s3 + $0x328] sm:$0xff]
    %v383 = vld [vmem:[%s3 + $0x330] sm:$0xff]
    %v384 = vld [vmem:[%s3 + $0x338] sm:$0xff]
    %v385 = vld [vmem:[%s3 + $0x340] sm:$0xff]
    %v386 = vld [vmem:[%s3 + $0x348] sm:$0xff]
    %v387 = vld [vmem:[%s3 + $0x350] sm:$0xff]
    %v388 = vld [vmem:[%s3 + $0x358] sm:$0xff]
    %v389 = vld [vmem:[%s3 + $0x360] sm:$0xff]
    %v390 = vld [vmem:[%s3 + $0x368] sm:$0xff]
    %v391 = vld [vmem:[%s3 + $0x370] sm:$0xff]
    %v392 = vld [vmem:[%s3 + $0x378] sm:$0xff]
    %v393 = vld [vmem:[%s3 + $0x380] sm:$0xff]
    %v394 = vld [vmem:[%s3 + $0x388] sm:$0xff]
    %v395 = vld [vmem:[%s3 + $0x390] sm:$0xff]
    %v396 = vld [vmem:[%s3 + $0x398] sm:$0xff]
    %v397 = vld [vmem:[%s3 + $0x3a0] sm:$0xff]
    %v398 = vld [vmem:[%s3 + $0x3a8] sm:$0xff]
    %v399 = vld [vmem:[%s3 + $0x3b0] sm:$0xff]
    %v400 = vld [vmem:[%s3 + $0x3b8] sm:$0xff]
    %v401 = vld [vmem:[%s3 + $0x3c0] sm:$0xff]
    %v402 = vld [vmem:[%s3 + $0x3c8] sm:$0xff]
    %v403 = vld [vmem:[%s3 + $0x3d0] sm:$0xff]
    %v404 = vld [vmem:[%s3 + $0x3d8] sm:$0xff]
    %v405 = vld [vmem:[%s3 + $0x3e0] sm:$0xff]
    %v406 = vld [vmem:[%s3 + $0x3e8] sm:$0xff]
    %v407 = vld [vmem:[%s3 + $0x3f0] sm:$0xff]
    %v408 = vld [vmem:[%s3 + $0x3f8] sm:$0xff]
    %v409 = vld [vmem:[%s3 + $0x400] sm:$0xff]
    %v410 = vld [vmem:[%s3 + $0x408] sm:$0xff]
    %v411 = vld [vmem:[%s3 + $0x410] sm:$0xff]
    %v412 = vld [vmem:[%s3 + $0x418] sm:$0xff]
    %v413 = vld [vmem:[%s3 + $0x420] sm:$0xff]
    %v414 = vld [vmem:[%s3 + $0x428] sm:$0xff]
    %v415 = vld [vmem:[%s3 + $0x430] sm:$0xff]
    %v416 = vld [vmem:[%s3 + $0x438] sm:$0xff]
    %v417 = vld [vmem:[%s3 + $0x440] sm:$0xff]
    %v418 = vld [vmem:[%s3 + $0x448] sm:$0xff]
    %v419 = vld [vmem:[%s3 + $0x450] sm:$0xff]
    %v420 = vld [vmem:[%s3 + $0x458] sm:$0xff]
    %v421 = vld [vmem:[%s3 + $0x460] sm:$0xff]
    %v422 = vld [vmem:[%s3 + $0x468] sm:$0xff]
    %v423 = vld [vmem:[%s3 + $0x470] sm:$0xff]
    %v424 = vld [vmem:[%s3 + $0x478] sm:$0xff]
    %v425 = vld [vmem:[%s3 + $0x480] sm:$0xff]
    %v426 = vld [vmem:[%s3 + $0x488] sm:$0xff]
    %v427 = vld [vmem:[%s3 + $0x490] sm:$0xff]
    %v428 = vld [vmem:[%s3 + $0x498] sm:$0xff]
    %v429 = vld [vmem:[%s3 + $0x4a0] sm:$0xff]
    %v430 = vld [vmem:[%s3 + $0x4a8] sm:$0xff]
    %v431 = vld [vmem:[%s3 + $0x4b0] sm:$0xff]
    %v432 = vld [vmem:[%s3 + $0x4b8] sm:$0xff]
    %v433 = vld [vmem:[%s3 + $0x4c0] sm:$0xff]
    %v434 = vld [vmem:[%s3 + $0x4c8] sm:$0xff]
    %v435 = vld [vmem:[%s3 + $0x4d0] sm:$0xff]
    %v436 = vld [vmem:[%s3 + $0x4d8] sm:$0xff]
    %v437 = vld [vmem:[%s3 + $0x4e0] sm:$0xff]
    %v438 = vld [vmem:[%s3 + $0x4e8] sm:$0xff]
    %v439 = vld [vmem:[%s3 + $0x4f0] sm:$0xff]
    %v440 = vld [vmem:[%s3 + $0x4f8] sm:$0xff]
    %v441 = vld [vmem:[%s3 + $0x500] sm:$0xff]
    %v442 = vld [vmem:[%s3 + $0x508] sm:$0xff]
    %v443 = vld [vmem:[%s3 + $0x510] sm:$0xff]
    %v444 = vld [vmem:[%s3 + $0x518] sm:$0xff]
    %v445 = vld [vmem:[%s3 + $0x520] sm:$0xff]
    %v446 = vld [vmem:[%s3 + $0x528] sm:$0xff]
    %v447 = vld [vmem:[%s3 + $0x530] sm:$0xff]
    %v448 = vld [vmem:[%s3 + $0x538] sm:$0xff]
    %v449 = vld [vmem:[%s3 + $0x540] sm:$0xff]
    %v450 = vld [vmem:[%s3 + $0x548] sm:$0xff]
    %v451 = vld [vmem:[%s3 + $0x550] sm:$0xff]
    %v452 = vld [vmem:[%s3 + $0x558] sm:$0xff]
    %v453 = vld [vmem:[%s3 + $0x560] sm:$0xff]
    %v454 = vld [vmem:[%s3 + $0x568] sm:$0xff]
    %v455 = vld [vmem:[%s3 + $0x570] sm:$0xff]
    %v456 = vld [vmem:[%s3 + $0x578] sm:$0xff]
    %v457 = vld [vmem:[%s3 + $0x580] sm:$0xff]
    %v458 = vld [vmem:[%s3 + $0x588] sm:$0xff]
    %v459 = vld [vmem:[%s3 + $0x590] sm:$0xff]
    %v460 = vld [vmem:[%s3 + $0x598] sm:$0xff]
    %v461 = vld [vmem:[%s3 + $0x5a0] sm:$0xff]
    %v462 = vld [vmem:[%s3 + $0x5a8] sm:$0xff]
    %v463 = vld [vmem:[%s3 + $0x5b0] sm:$0xff]
    %v464 = vld [vmem:[%s3 + $0x5b8] sm:$0xff]
    %v465 = vld [vmem:[%s3 + $0x5c0] sm:$0xff]
    %v466 = vld [vmem:[%s3 + $0x5c8] sm:$0xff]
    %v467 = vld [vmem:[%s3 + $0x5d0] sm:$0xff]
    %v468 = vld [vmem:[%s3 + $0x5d8] sm:$0xff]
    %v469 = vld [vmem:[%s3 + $0x5e0] sm:$0xff]
    %v470 = vld [vmem:[%s3 + $0x5e8] sm:$0xff]
    %v471 = vld [vmem:[%s3 + $0x5f0] sm:$0xff]
    %v472 = vld [vmem:[%s3 + $0x5f8] sm:$0xff]
    %v473 = vld [vmem:[%s3 + $0x600] sm:$0xff]
    %v474 = vld [vmem:[%s3 + $0x608] sm:$0xff]
    %v475 = vld [vmem:[%s3 + $0x610] sm:$0xff]
    %v476 = vld [vmem:[%s3 + $0x618] sm:$0xff]
    %v477 = vld [vmem:[%s3 + $0x620] sm:$0xff]
    %v478 = vld [vmem:[%s3 + $0x628] sm:$0xff]
    %v479 = vld [vmem:[%s3 + $0x630] sm:$0xff]
    %v480 = vld [vmem:[%s3 + $0x638] sm:$0xff]
    %v481 = vld [vmem:[%s3 + $0x640] sm:$0xff]
    %v482 = vld [vmem:[%s3 + $0x648] sm:$0xff]
    %v483 = vld [vmem:[%s3 + $0x650] sm:$0xff]
    %v484 = vld [vmem:[%s3 + $0x658] sm:$0xff]
    %v485 = vld [vmem:[%s3 + $0x660] sm:$0xff]
    %v486 = vld [vmem:[%s3 + $0x668] sm:$0xff]
    %v487 = vld [vmem:[%s3 + $0x670] sm:$0xff]
    %v488 = vld [vmem:[%s3 + $0x678] sm:$0xff]
    %v489 = vld [vmem:[%s3 + $0x680] sm:$0xff]
    %v490 = vld [vmem:[%s3 + $0x688] sm:$0xff]
    %v491 = vld [vmem:[%s3 + $0x690] sm:$0xff]
    %v492 = vld [vmem:[%s3 + $0x698] sm:$0xff]
    %v493 = vld [vmem:[%s3 + $0x6a0] sm:$0xff]
    %v494 = vld [vmem:[%s3 + $0x6a8] sm:$0xff]
    %v495 = vld [vmem:[%s3 + $0x6b0] sm:$0xff]
    %v496 = vld [vmem:[%s3 + $0x6b8] sm:$0xff]
    %v497 = vld [vmem:[%s3 + $0x6c0] sm:$0xff]
    %v498 = vld [vmem:[%s3 + $0x6c8] sm:$0xff]
    %v499 = vld [vmem:[%s3 + $0x6d0] sm:$0xff]
    %v500 = vld [vmem:[%s3 + $0x6d8] sm:$0xff]
    %v501 = vld [vmem:[%s3 + $0x6e0] sm:$0xff]
    %v502 = vld [vmem:[%s3 + $0x6e8] sm:$0xff]
    %v503 = vld [vmem:[%s3 + $0x6f0] sm:$0xff]
    %v504 = vld [vmem:[%s3 + $0x6f8] sm:$0xff]
    %v505 = vld [vmem:[%s3 + $0x700] sm:$0xff]
    %v506 = vld [vmem:[%s3 + $0x708] sm:$0xff]
    %v507 = vld [vmem:[%s3 + $0x710] sm:$0xff]
    %v508 = vld [vmem:[%s3 + $0x718] sm:$0xff]
    %v509 = vld [vmem:[%s3 + $0x720] sm:$0xff]
    %v510 = vld [vmem:[%s3 + $0x728] sm:$0xff]
    %v511 = vld [vmem:[%s3 + $0x730] sm:$0xff]
    %v512 = vld [vmem:[%s3 + $0x738] sm:$0xff]
    %v513 = vld [vmem:[%s3 + $0x740] sm:$0xff]
    %v514 = vld [vmem:[%s3 + $0x748] sm:$0xff]
    %v515 = vld [vmem:[%s3 + $0x750] sm:$0xff]
    %v516 = vld [vmem:[%s3 + $0x758] sm:$0xff]
    %v517 = vld [vmem:[%s3 + $0x760] sm:$0xff]
    %v518 = vld [vmem:[%s3 + $0x768] sm:$0xff]
    %v519 = vld [vmem:[%s3 + $0x770] sm:$0xff]
    %v520 = vld [vmem:[%s3 + $0x778] sm:$0xff]
    %v521 = vld [vmem:[%s3 + $0x780] sm:$0xff]
    %v522 = vld [vmem:[%s3 + $0x788] sm:$0xff]
    %v523 = vld [vmem:[%s3 + $0x790] sm:$0xff]
    %v524 = vld [vmem:[%s3 + $0x798] sm:$0xff]
    %v525 = vld [vmem:[%s3 + $0x7a0] sm:$0xff]
    %v526 = vld [vmem:[%s3 + $0x7a8] sm:$0xff]
    %v527 = vld [vmem:[%s3 + $0x7b0] sm:$0xff]
    %v528 = vld [vmem:[%s3 + $0x7b8] sm:$0xff]
    %v529 = vld [vmem:[%s3 + $0x7c0] sm:$0xff]
    %v530 = vld [vmem:[%s3 + $0x7c8] sm:$0xff]
    %v531 = vld [vmem:[%s3 + $0x7d0] sm:$0xff]
    %v532 = vld [vmem:[%s3 + $0x7d8] sm:$0xff]
    %v533 = vld [vmem:[%s3 + $0x7e0] sm:$0xff]
    %v534 = vld [vmem:[%s3 + $0x7e8] sm:$0xff]
    %v535 = vld [vmem:[%s3 + $0x7f0] sm:$0xff]
    %v536 = vld [vmem:[%s3 + $0x7f8] sm:$0xff]
    %v537 = vld [vmem:[%s4] sm:$0x1]
    %v539 = vperm.slane %v537, 0
    %545 = vst [vmem:[#allocation1] ss:$4 sm:$0xff] %v277
    %s546 = scalar_lea.vmem [#allocation1], 32
    %547 = vst [vmem:[%s546] ss:$4 sm:$0xff] %v278
    %v548 = vld.sshfl [vmem:[#allocation1] sm:$0xff pattern:$0x73625140]
    %v549 = vld.sshfl [vmem:[#allocation1 + $0x8] sm:$0xff pattern:$0x73625140]
    %v550 = vld.sshfl [vmem:[#allocation1 + $0x10] sm:$0xff pattern:$0x73625140]
    %v551 = vld.sshfl [vmem:[#allocation1 + $0x18] sm:$0xff pattern:$0x73625140]
    %v552 = vld.sshfl [vmem:[#allocation1 + $0x20] sm:$0xff pattern:$0x73625140]
    %v553 = vld.sshfl [vmem:[#allocation1 + $0x28] sm:$0xff pattern:$0x73625140]
    %v554 = vld.sshfl [vmem:[#allocation1 + $0x30] sm:$0xff pattern:$0x73625140]
    %v555 = vld.sshfl [vmem:[#allocation1 + $0x38] sm:$0xff pattern:$0x73625140]
    %556 = vst [vmem:[#allocation1] ss:$4 sm:$0xff] %v279
    %557 = vst [vmem:[%s546] ss:$4 sm:$0xff] %v280
    %v558 = vld.sshfl [vmem:[#allocation1] sm:$0xff pattern:$0x73625140]
    %v559 = vld.sshfl [vmem:[#allocation1 + $0x8] sm:$0xff pattern:$0x73625140]
    %v560 = vld.sshfl [vmem:[#allocation1 + $0x10] sm:$0xff pattern:$0x73625140]
    %v561 = vld.sshfl [vmem:[#allocation1 + $0x18] sm:$0xff pattern:$0x73625140]
    %v562 = vld.sshfl [vmem:[#allocation1 + $0x20] sm:$0xff pattern:$0x73625140]
    %v563 = vld.sshfl [vmem:[#allocation1 + $0x28] sm:$0xff pattern:$0x73625140]
    %v564 = vld.sshfl [vmem:[#allocation1 + $0x30] sm:$0xff pattern:$0x73625140]
    %v565 = vld.sshfl [vmem:[#allocation1 + $0x38] sm:$0xff pattern:$0x73625140]
    %582 = vmatpush.msra.mxu0 %v296
    %583 = vmatpush.msra.mxu0 %v295
    %584 = vmatpush.msra.mxu0 %v294
    %585 = vmatpush.msra.mxu0 %v293
    %586 = vmatpush.msra.mxu0 %v292
    %587 = vmatpush.msra.mxu0 %v291
    %588 = vmatpush.msra.mxu0 %v290
    %589 = vmatpush.msra.mxu0 %v289
    %590 = vmatpush.msra.mxu0 %v288
    %591 = vmatpush.msra.mxu0 %v287
    %592 = vmatpush.msra.mxu0 %v286
    %593 = vmatpush.msra.mxu0 %v285
    %594 = vmatpush.msra.mxu0 %v284
    %595 = vmatpush.msra.mxu0 %v283
    %596 = vmatpush.msra.mxu0 %v282
    %597 = vmatpush.msra.mxu0 %v281
    %598 = vmatmul.f32.gmra.mxu0 %v548
    %v599 = vpop.f32.mrf.mxu0
    %v600 = vadd.f32 %v539, %v599
    %601 = vdwg.mxu0
    %602 = vmatpush.msra.mxu0 %v312
    %603 = vmatpush.msra.mxu0 %v311
    %604 = vmatpush.msra.mxu0 %v310
    %605 = vmatpush.msra.mxu0 %v309
    %606 = vmatpush.msra.mxu0 %v308
    %607 = vmatpush.msra.mxu0 %v307
    %608 = vmatpush.msra.mxu0 %v306
    %609 = vmatpush.msra.mxu0 %v305
    %610 = vmatpush.msra.mxu0 %v304
    %611 = vmatpush.msra.mxu0 %v303
    %612 = vmatpush.msra.mxu0 %v302
    %613 = vmatpush.msra.mxu0 %v301
    %614 = vmatpush.msra.mxu0 %v300
    %615 = vmatpush.msra.mxu0 %v299
    %616 = vmatpush.msra.mxu0 %v298
    %617 = vmatpush.msra.mxu0 %v297
    %618 = vmatmul.f32.gmra.mxu0 %v549
    %v619 = vpop.f32.mrf.mxu0
    %v620 = vadd.f32 %v600, %v619
    %621 = vdwg.mxu0
    %622 = vmatpush.msra.mxu0 %v328
    %623 = vmatpush.msra.mxu0 %v327
    %624 = vmatpush.msra.mxu0 %v326
    %625 = vmatpush.msra.mxu0 %v325
    %626 = vmatpush.msra.mxu0 %v324
    %627 = vmatpush.msra.mxu0 %v323
    %628 = vmatpush.msra.mxu0 %v322
    %629 = vmatpush.msra.mxu0 %v321
    %630 = vmatpush.msra.mxu0 %v320
    %631 = vmatpush.msra.mxu0 %v319
    %632 = vmatpush.msra.mxu0 %v318
    %633 = vmatpush.msra.mxu0 %v317
    %634 = vmatpush.msra.mxu0 %v316
    %635 = vmatpush.msra.mxu0 %v315
    %636 = vmatpush.msra.mxu0 %v314
    %637 = vmatpush.msra.mxu0 %v313
    %638 = vmatmul.f32.gmra.mxu0 %v550
    %v639 = vpop.f32.mrf.mxu0
    %v640 = vadd.f32 %v620, %v639
    %641 = vdwg.mxu0
    %642 = vmatpush.msra.mxu0 %v344
    %643 = vmatpush.msra.mxu0 %v343
    %644 = vmatpush.msra.mxu0 %v342
    %645 = vmatpush.msra.mxu0 %v341
    %646 = vmatpush.msra.mxu0 %v340
    %647 = vmatpush.msra.mxu0 %v339
    %648 = vmatpush.msra.mxu0 %v338
    %649 = vmatpush.msra.mxu0 %v337
    %650 = vmatpush.msra.mxu0 %v336
    %651 = vmatpush.msra.mxu0 %v335
    %652 = vmatpush.msra.mxu0 %v334
    %653 = vmatpush.msra.mxu0 %v333
    %654 = vmatpush.msra.mxu0 %v332
    %655 = vmatpush.msra.mxu0 %v331
    %656 = vmatpush.msra.mxu0 %v330
    %657 = vmatpush.msra.mxu0 %v329
    %658 = vmatmul.f32.gmra.mxu0 %v551
    %v659 = vpop.f32.mrf.mxu0
    %v660 = vadd.f32 %v640, %v659
    %661 = vdwg.mxu0
    %662 = vmatpush.msra.mxu0 %v360
    %663 = vmatpush.msra.mxu0 %v359
    %664 = vmatpush.msra.mxu0 %v358
    %665 = vmatpush.msra.mxu0 %v357
    %666 = vmatpush.msra.mxu0 %v356
    %667 = vmatpush.msra.mxu0 %v355
    %668 = vmatpush.msra.mxu0 %v354
    %669 = vmatpush.msra.mxu0 %v353
    %670 = vmatpush.msra.mxu0 %v352
    %671 = vmatpush.msra.mxu0 %v351
    %672 = vmatpush.msra.mxu0 %v350
    %673 = vmatpush.msra.mxu0 %v349
    %674 = vmatpush.msra.mxu0 %v348
    %675 = vmatpush.msra.mxu0 %v347
    %676 = vmatpush.msra.mxu0 %v346
    %677 = vmatpush.msra.mxu0 %v345
    %678 = vmatmul.f32.gmra.mxu0 %v552
    %v679 = vpop.f32.mrf.mxu0
    %v680 = vadd.f32 %v660, %v679
    %681 = vdwg.mxu0
    %682 = vmatpush.msra.mxu0 %v376
    %683 = vmatpush.msra.mxu0 %v375
    %684 = vmatpush.msra.mxu0 %v374
    %685 = vmatpush.msra.mxu0 %v373
    %686 = vmatpush.msra.mxu0 %v372
    %687 = vmatpush.msra.mxu0 %v371
    %688 = vmatpush.msra.mxu0 %v370
    %689 = vmatpush.msra.mxu0 %v369
    %690 = vmatpush.msra.mxu0 %v368
    %691 = vmatpush.msra.mxu0 %v367
    %692 = vmatpush.msra.mxu0 %v366
    %693 = vmatpush.msra.mxu0 %v365
    %694 = vmatpush.msra.mxu0 %v364
    %695 = vmatpush.msra.mxu0 %v363
    %696 = vmatpush.msra.mxu0 %v362
    %697 = vmatpush.msra.mxu0 %v361
    %698 = vmatmul.f32.gmra.mxu0 %v553
    %v699 = vpop.f32.mrf.mxu0
    %v700 = vadd.f32 %v680, %v699
    %701 = vdwg.mxu0
    %702 = vmatpush.msra.mxu0 %v392
    %703 = vmatpush.msra.mxu0 %v391
    %704 = vmatpush.msra.mxu0 %v390
    %705 = vmatpush.msra.mxu0 %v389
    %706 = vmatpush.msra.mxu0 %v388
    %707 = vmatpush.msra.mxu0 %v387
    %708 = vmatpush.msra.mxu0 %v386
    %709 = vmatpush.msra.mxu0 %v385
    %710 = vmatpush.msra.mxu0 %v384
    %711 = vmatpush.msra.mxu0 %v383
    %712 = vmatpush.msra.mxu0 %v382
    %713 = vmatpush.msra.mxu0 %v381
    %714 = vmatpush.msra.mxu0 %v380
    %715 = vmatpush.msra.mxu0 %v379
    %716 = vmatpush.msra.mxu0 %v378
    %717 = vmatpush.msra.mxu0 %v377
    %718 = vmatmul.f32.gmra.mxu0 %v554
    %v719 = vpop.f32.mrf.mxu0
    %v720 = vadd.f32 %v700, %v719
    %721 = vdwg.mxu0
    %722 = vmatpush.msra.mxu0 %v408
    %723 = vmatpush.msra.mxu0 %v407
    %724 = vmatpush.msra.mxu0 %v406
    %725 = vmatpush.msra.mxu0 %v405
    %726 = vmatpush.msra.mxu0 %v404
    %727 = vmatpush.msra.mxu0 %v403
    %728 = vmatpush.msra.mxu0 %v402
    %729 = vmatpush.msra.mxu0 %v401
    %730 = vmatpush.msra.mxu0 %v400
    %731 = vmatpush.msra.mxu0 %v399
    %732 = vmatpush.msra.mxu0 %v398
    %733 = vmatpush.msra.mxu0 %v397
    %734 = vmatpush.msra.mxu0 %v396
    %735 = vmatpush.msra.mxu0 %v395
    %736 = vmatpush.msra.mxu0 %v394
    %737 = vmatpush.msra.mxu0 %v393
    %738 = vmatmul.f32.gmra.mxu0 %v555
    %v739 = vpop.f32.mrf.mxu0
    %v740 = vadd.f32 %v720, %v739
    %741 = vdwg.mxu0
    %742 = vmatpush.msra.mxu0 %v424
    %743 = vmatpush.msra.mxu0 %v423
    %744 = vmatpush.msra.mxu0 %v422
    %745 = vmatpush.msra.mxu0 %v421
    %746 = vmatpush.msra.mxu0 %v420
    %747 = vmatpush.msra.mxu0 %v419
    %748 = vmatpush.msra.mxu0 %v418
    %749 = vmatpush.msra.mxu0 %v417
    %750 = vmatpush.msra.mxu0 %v416
    %751 = vmatpush.msra.mxu0 %v415
    %752 = vmatpush.msra.mxu0 %v414
    %753 = vmatpush.msra.mxu0 %v413
    %754 = vmatpush.msra.mxu0 %v412
    %755 = vmatpush.msra.mxu0 %v411
    %756 = vmatpush.msra.mxu0 %v410
    %757 = vmatpush.msra.mxu0 %v409
    %758 = vmatmul.f32.gmra.mxu0 %v558
    %v759 = vpop.f32.mrf.mxu0
    %v760 = vadd.f32 %v740, %v759
    %761 = vdwg.mxu0
    %762 = vmatpush.msra.mxu0 %v440
    %763 = vmatpush.msra.mxu0 %v439
    %764 = vmatpush.msra.mxu0 %v438
    %765 = vmatpush.msra.mxu0 %v437
    %766 = vmatpush.msra.mxu0 %v436
    %767 = vmatpush.msra.mxu0 %v435
    %768 = vmatpush.msra.mxu0 %v434
    %769 = vmatpush.msra.mxu0 %v433
    %770 = vmatpush.msra.mxu0 %v432
    %771 = vmatpush.msra.mxu0 %v431
    %772 = vmatpush.msra.mxu0 %v430
    %773 = vmatpush.msra.mxu0 %v429
    %774 = vmatpush.msra.mxu0 %v428
    %775 = vmatpush.msra.mxu0 %v427
    %776 = vmatpush.msra.mxu0 %v426
    %777 = vmatpush.msra.mxu0 %v425
    %778 = vmatmul.f32.gmra.mxu0 %v559
    %v779 = vpop.f32.mrf.mxu0
    %v780 = vadd.f32 %v760, %v779
    %781 = vdwg.mxu0
    %782 = vmatpush.msra.mxu0 %v456
    %783 = vmatpush.msra.mxu0 %v455
    %784 = vmatpush.msra.mxu0 %v454
    %785 = vmatpush.msra.mxu0 %v453
    %786 = vmatpush.msra.mxu0 %v452
    %787 = vmatpush.msra.mxu0 %v451
    %788 = vmatpush.msra.mxu0 %v450
    %789 = vmatpush.msra.mxu0 %v449
    %790 = vmatpush.msra.mxu0 %v448
    %791 = vmatpush.msra.mxu0 %v447
    %792 = vmatpush.msra.mxu0 %v446
    %793 = vmatpush.msra.mxu0 %v445
    %794 = vmatpush.msra.mxu0 %v444
    %795 = vmatpush.msra.mxu0 %v443
    %796 = vmatpush.msra.mxu0 %v442
    %797 = vmatpush.msra.mxu0 %v441
    %798 = vmatmul.f32.gmra.mxu0 %v560
    %v799 = vpop.f32.mrf.mxu0
    %v800 = vadd.f32 %v780, %v799
    %801 = vdwg.mxu0
    %802 = vmatpush.msra.mxu0 %v472
    %803 = vmatpush.msra.mxu0 %v471
    %804 = vmatpush.msra.mxu0 %v470
    %805 = vmatpush.msra.mxu0 %v469
    %806 = vmatpush.msra.mxu0 %v468
    %807 = vmatpush.msra.mxu0 %v467
    %808 = vmatpush.msra.mxu0 %v466
    %809 = vmatpush.msra.mxu0 %v465
    %810 = vmatpush.msra.mxu0 %v464
    %811 = vmatpush.msra.mxu0 %v463
    %812 = vmatpush.msra.mxu0 %v462
    %813 = vmatpush.msra.mxu0 %v461
    %814 = vmatpush.msra.mxu0 %v460
    %815 = vmatpush.msra.mxu0 %v459
    %816 = vmatpush.msra.mxu0 %v458
    %817 = vmatpush.msra.mxu0 %v457
    %818 = vmatmul.f32.gmra.mxu0 %v561
    %v819 = vpop.f32.mrf.mxu0
    %v820 = vadd.f32 %v800, %v819
    %821 = vdwg.mxu0
    %822 = vmatpush.msra.mxu0 %v488
    %823 = vmatpush.msra.mxu0 %v487
    %824 = vmatpush.msra.mxu0 %v486
    %825 = vmatpush.msra.mxu0 %v485
    %826 = vmatpush.msra.mxu0 %v484
    %827 = vmatpush.msra.mxu0 %v483
    %828 = vmatpush.msra.mxu0 %v482
    %829 = vmatpush.msra.mxu0 %v481
    %830 = vmatpush.msra.mxu0 %v480
    %831 = vmatpush.msra.mxu0 %v479
    %832 = vmatpush.msra.mxu0 %v478
    %833 = vmatpush.msra.mxu0 %v477
    %834 = vmatpush.msra.mxu0 %v476
    %835 = vmatpush.msra.mxu0 %v475
    %836 = vmatpush.msra.mxu0 %v474
    %837 = vmatpush.msra.mxu0 %v473
    %838 = vmatmul.f32.gmra.mxu0 %v562
    %v839 = vpop.f32.mrf.mxu0
    %v840 = vadd.f32 %v820, %v839
    %841 = vdwg.mxu0
    %842 = vmatpush.msra.mxu0 %v504
    %843 = vmatpush.msra.mxu0 %v503
    %844 = vmatpush.msra.mxu0 %v502
    %845 = vmatpush.msra.mxu0 %v501
    %846 = vmatpush.msra.mxu0 %v500
    %847 = vmatpush.msra.mxu0 %v499
    %848 = vmatpush.msra.mxu0 %v498
    %849 = vmatpush.msra.mxu0 %v497
    %850 = vmatpush.msra.mxu0 %v496
    %851 = vmatpush.msra.mxu0 %v495
    %852 = vmatpush.msra.mxu0 %v494
    %853 = vmatpush.msra.mxu0 %v493
    %854 = vmatpush.msra.mxu0 %v492
    %855 = vmatpush.msra.mxu0 %v491
    %856 = vmatpush.msra.mxu0 %v490
    %857 = vmatpush.msra.mxu0 %v489
    %858 = vmatmul.f32.gmra.mxu0 %v563
    %v859 = vpop.f32.mrf.mxu0
    %v860 = vadd.f32 %v840, %v859
    %861 = vdwg.mxu0
    %862 = vmatpush.msra.mxu0 %v520
    %863 = vmatpush.msra.mxu0 %v519
    %864 = vmatpush.msra.mxu0 %v518
    %865 = vmatpush.msra.mxu0 %v517
    %866 = vmatpush.msra.mxu0 %v516
    %867 = vmatpush.msra.mxu0 %v515
    %868 = vmatpush.msra.mxu0 %v514
    %869 = vmatpush.msra.mxu0 %v513
    %870 = vmatpush.msra.mxu0 %v512
    %871 = vmatpush.msra.mxu0 %v511
    %872 = vmatpush.msra.mxu0 %v510
    %873 = vmatpush.msra.mxu0 %v509
    %874 = vmatpush.msra.mxu0 %v508
    %875 = vmatpush.msra.mxu0 %v507
    %876 = vmatpush.msra.mxu0 %v506
    %877 = vmatpush.msra.mxu0 %v505
    %878 = vmatmul.f32.gmra.mxu0 %v564
    %v879 = vpop.f32.mrf.mxu0
    %v880 = vadd.f32 %v860, %v879
    %881 = vdwg.mxu0
    %882 = vmatpush.msra.mxu0 %v536
    %883 = vmatpush.msra.mxu0 %v535
    %884 = vmatpush.msra.mxu0 %v534
    %885 = vmatpush.msra.mxu0 %v533
    %886 = vmatpush.msra.mxu0 %v532
    %887 = vmatpush.msra.mxu0 %v531
    %888 = vmatpush.msra.mxu0 %v530
    %889 = vmatpush.msra.mxu0 %v529
    %890 = vmatpush.msra.mxu0 %v528
    %891 = vmatpush.msra.mxu0 %v527
    %892 = vmatpush.msra.mxu0 %v526
    %893 = vmatpush.msra.mxu0 %v525
    %894 = vmatpush.msra.mxu0 %v524
    %895 = vmatpush.msra.mxu0 %v523
    %896 = vmatpush.msra.mxu0 %v522
    %897 = vmatpush.msra.mxu0 %v521
    %898 = vmatmul.f32.gmra.mxu0 %v565
    %v899 = vpop.f32.mrf.mxu0
    %v900 = vadd.f32 %v880, %v899
    %901 = vdwg.mxu0
    %v902 = vtanh.pop %v900
    %v903 = vld [vmem:[%s5] sm:$0xff]
    %v904 = vld [vmem:[%s5 + $0x8] sm:$0xff]
    %v905 = vld [vmem:[%s5 + $0x10] sm:$0xff]
    %v906 = vld [vmem:[%s5 + $0x18] sm:$0xff]
    %v907 = vld [vmem:[%s5 + $0x20] sm:$0xff]
    %v908 = vld [vmem:[%s5 + $0x28] sm:$0xff]
    %v909 = vld [vmem:[%s5 + $0x30] sm:$0xff]
    %v910 = vld [vmem:[%s5 + $0x38] sm:$0xff]
    %v911 = vld [vmem:[%s6] sm:$0x1]
    %v913 = vperm.slane %v911, 0
    %vm915 = vcmask 523264
    %v917 = vsel %vm915, %v902, 0
    %919 = vmatpush.msra.mxu0 0.0
    %920 = vmatpush.msra.mxu0 0.0
    %921 = vmatpush.msra.mxu0 0.0
    %922 = vmatpush.msra.mxu0 0.0
    %923 = vmatpush.msra.mxu0 0.0
    %924 = vmatpush.msra.mxu0 0.0
    %925 = vmatpush.msra.mxu0 0.0
    %926 = vmatpush.msra.mxu0 0.0
    %927 = vmatpush.msra.mxu0 %v910
    %928 = vmatpush.msra.mxu0 %v909
    %929 = vmatpush.msra.mxu0 %v908
    %930 = vmatpush.msra.mxu0 %v907
    %931 = vmatpush.msra.mxu0 %v906
    %932 = vmatpush.msra.mxu0 %v905
    %933 = vmatpush.msra.mxu0 %v904
    %934 = vmatpush.msra.mxu0 %v903
    %935 = vmatmul.f32.gmra.mxu0 %v917
    %v936 = vpop.f32.mrf.mxu0
    %v937 = vadd.f32 %v913, %v936
    %938 = vdwg.mxu0
    %v939 = vtanh.pop %v937
    %v940 = vld [vmem:[%s7] sm:$0xff]
    %v941 = vld [vmem:[%s7 + $0x8] sm:$0xff]
    %v942 = vld [vmem:[%s7 + $0x10] sm:$0xff]
    %v943 = vld [vmem:[%s7 + $0x18] sm:$0xff]
    %v944 = vld [vmem:[%s8] sm:$0x1]
    %v946 = vperm.slane %v944, 0
    %vm948 = vcmask 261120
    %v950 = vsel %vm948, %v939, 0
    %952 = vmatpush.msra.mxu0 0.0
    %953 = vmatpush.msra.mxu0 0.0
    %954 = vmatpush.msra.mxu0 0.0
    %955 = vmatpush.msra.mxu0 0.0
    %956 = vmatpush.msra.mxu0 0.0
    %957 = vmatpush.msra.mxu0 0.0
    %958 = vmatpush.msra.mxu0 0.0
    %959 = vmatpush.msra.mxu0 0.0
    %960 = vmatpush.msra.mxu0 0.0
    %961 = vmatpush.msra.mxu0 0.0
    %962 = vmatpush.msra.mxu0 0.0
    %963 = vmatpush.msra.mxu0 0.0
    %964 = vmatpush.msra.mxu0 %v943
    %965 = vmatpush.msra.mxu0 %v942
    %966 = vmatpush.msra.mxu0 %v941
    %967 = vmatpush.msra.mxu0 %v940
    %968 = vmatmul.f32.gmra.mxu0 %v950
    %v969 = vpop.f32.mrf.mxu0
    %v970 = vadd.f32 %v946, %v969
    %971 = vdwg.mxu0
    %vm972 = vcmask 25600
    %v973 = vsel %vm972, %v970, -inf
    %974 = vmax.xlane.f32.xlu0 %v973
    %v975 = vpop.xlane.xlu0 %974
    %v976 = vsub.f32 %v970, %v975
    %v977 = vmul.f32 %v976, 1.442695
    %v978 = vpow.pop %v977
    %v979 = vsel %vm972, %v978, 0.0
    %980 = vadd.xlane.f32.xlu0 %v979
    %v981 = vpop.xlane.xlu0 %980
    %v982 = vrcp.pop %v981
    %v983 = vmul.f32 %v981, %v982
    %v984 = vsub.f32 1.0, %v983
    %v985 = vmul.f32 %v982, %v984
    %v986 = vadd.f32 %v982, %v985
    %vm987 = vweird.f32 %v981
    %vm988 = vweird.f32 %v982
    %vm989 = vmor %vm987, %vm988
    %v990 = vsel %vm989, %v982, %v986
    %v991 = vand.u32 2147483647, %v981
    %vm992 = vcmp.eq.f32.partialorder %v991, 8.507059e+37
    %v993 = vand.u32 %v981, 2147483648
    %v994 = vor.u32 1.1754944e-38, %v993
    %v995 = vsel %vm992, %v994, %v990
    %v996 = vmul.f32 %v978, %v995
    %997 = vst.msk [vmem:[#allocation3] sm:$0x3] %vm972, %v996
    // Predicated region
    $region38: #{tpu_custom_call.1} parent=1 // pred_check
      _
    $region39: #{tpu_custom_call.1} parent=1 // pred_check_branch
      %999 = sbr.rel (0) target = $region41
    $region40: #{tpu_custom_call.1} parent=1 // pred_region
      %1001 = vsyncadd [#allocation4], 0
      %s1003 = sshll.u32 [#allocation3], 4
      %s1004 = int_to_ptr.vmem [resolvable:$true] %s1003
      %s1005 = sshll.u32 %s9, 4
      %s1006 = int_to_ptr.hbm [resolvable:$true] %s1005
      %1008 = dma.vmem_to_hbm [thread:$0]  %s1004, 32, %s1006, [#allocation4]
    $region41: #{tpu_custom_call.1} parent=1 // pred_fallthru
      _
    // Predicated region
    $region42: #{tpu_custom_call.1} parent=1 // pred_check
      _
    $region43: #{tpu_custom_call.1} parent=1 // pred_check_branch
      %1010 = sbr.rel (0) target = $region45
    $region44: #{tpu_custom_call.1} parent=1 // pred_region
      %1012 = dma.done [#allocation4], 32
    $region45: #{tpu_custom_call.1} parent=1 // pred_fallthru
      _
    %1013 = vsyncpa [#allocation4], 1

</llo_original>
